<compile_context>
chip_gen: v7x
topology: tpu7x:2x2x1
jax: 0.10.0
libtpu: 0.0.40
codegen_flags: <defaults>
</compile_context>

<pallas_src>
import functools

import jax
import jax.numpy as jnp
import numpy as np
from jax.experimental import pallas as pl
from jax.experimental.pallas import tpu as pltpu

LANE = 128
SUBLANE = 8
VMEM_BUDGET_BYTES = 48 * 1024 * 1024  # conservative (v7x has 64 MiB total VMEM)


def _round_up(x: int, m: int) -> int:
    return ((x + m - 1) // m) * m


def _make_actor_kernel(num_layers: int, action_dim: int,
                       log_std_min: float, log_std_max: float):
    """Build a kernel for `num_layers` Linear layers (ReLU between, linear out)."""

    def kernel(*refs):
        obs_ref = refs[0]
        w_refs = refs[1:1 + num_layers]
        b_refs = refs[1 + num_layers:1 + 2 * num_layers]
        out_ref = refs[1 + 2 * num_layers]

        # First matmul straight from the bf16 obs tile (no f32 staging of the input).
        h = jnp.dot(obs_ref[...], w_refs[0][...],
                    preferred_element_type=jnp.float32)
        h = h + b_refs[0][...]                  # (1, N) broadcast, f32
        if num_layers > 1:
            h = jnp.maximum(h, 0.0)

        for li in range(1, num_layers):
            # bf16 MXU inputs, f32 accumulation; bias-add / ReLU stay f32.
            h = jnp.dot(h.astype(jnp.bfloat16), w_refs[li][...],
                        preferred_element_type=jnp.float32)
            h = h + b_refs[li][...]
            if li < num_layers - 1:             # out_linear=True -> no ReLU on last layer
                h = jnp.maximum(h, 0.0)

        # h: (B_tile, OUT_PAD) trunk output. Lanes [0, A) = mu, [A, 2A) = log_std.
        # tanh/exp run on the full slab (EUP slot, effectively free filler); the
        # per-lane select keeps raw h on the mu lanes.
        lane = jax.lax.broadcasted_iota(jnp.int32, h.shape, 1)
        t = jnp.tanh(h)
        log_std = log_std_min + 0.5 * (log_std_max - log_std_min) * (t + 1.0)
        std = jnp.exp(log_std)                  # bounded: log_std in [min, max]
        out_ref[...] = jnp.where(lane >= action_dim, std, h)

    return kernel


def _pick_batch_tile(B: int, in_pad, out_pad, b_tile_req: int) -> int:
    """Largest sublane-aligned batch tile that fits the VMEM budget."""
    w_bytes = sum(ip * op * 2 for ip, op in zip(in_pad, out_pad))  # bf16 weights
    b_bytes = sum(op * 4 for op in out_pad)                        # f32 biases
    resident = w_bytes + b_bytes
    max_feat = max(max(in_pad), max(out_pad))

    bt = max(SUBLANE, min(int(b_tile_req), _round_up(B, SUBLANE)))
    bt = _round_up(bt, SUBLANE)
    while bt > SUBLANE:
        # double-buffered obs tile (bf16) + double-buffered out tile (f32)
        # + ~3 live f32 activation slabs inside the body.
        per_tile = (2 * bt * in_pad[0] * 2
                    + 2 * bt * out_pad[-1] * 4
                    + 3 * bt * max_feat * 4)
        if resident + per_tile <= VMEM_BUDGET_BYTES:
            break
        bt //= 2
        bt = _round_up(max(bt, SUBLANE), SUBLANE)
    return bt


@functools.partial(jax.jit, static_argnames=("action_dim", "log_std_bounds", "b_tile"))
def drq_actor_forward(obs, weights, biases, *, action_dim, log_std_bounds,
                      b_tile: int = 512):
    """Fused DrQActor forward.

    Args:
      obs:     (B, D) float32 encoded observations (Identity encoder).
      weights: tuple of PyTorch-layout Linear weights, weights[i] shape (out_i, in_i).
      biases:  tuple of biases, biases[i] shape (out_i,).
      action_dim: A; last layer out_features must equal 2*A.
      log_std_bounds: (log_std_min, log_std_max).

    Returns:
      (mu, std), each (B, action_dim) float32.
    """
    log_std_min, log_std_max = (float(log_std_bounds[0]), float(log_std_bounds[1]))
    num_layers = len(weights)
    B, D = obs.shape
    out_dim = weights[-1].shape[0]
    assert out_dim == 2 * action_dim, "last Linear must output 2*action_dim"

    in_dims = [w.shape[1] for w in weights]
    out_dims = [w.shape[0] for w in weights]
    assert in_dims[0] == D
    in_pad = [_round_up(d, LANE) for d in in_dims]
    out_pad = [_round_up(d, LANE) for d in out_dims]

    bt = _pick_batch_tile(B, in_pad, out_pad, b_tile)
    B_pad = _round_up(B, bt)

    # Zero-pad obs (extra rows/lanes contribute exactly zero through the MLP) and
    # stream it as bf16: the first MXU input is bf16 anyway, so no extra accuracy
    # loss, but half the HBM read traffic / obs VMEM footprint.
    obs_p = jnp.zeros((B_pad, in_pad[0]), jnp.bfloat16).at[:B, :D].set(
        obs.astype(jnp.bfloat16))

    # Transpose PyTorch (out, in) -> (in, out) for x @ W semantics, zero-pad,
    # pre-cast weights to bf16; biases stay f32.
    w_p, b_p = [], []
    for li in range(num_layers):
        wt = jnp.asarray(weights[li], jnp.float32).T       # (in, out)
        wpad = jnp.zeros((in_pad[li], out_pad[li]), jnp.float32)
        wpad = wpad.at[:in_dims[li], :out_dims[li]].set(wt)
        w_p.append(wpad.astype(jnp.bfloat16))
        bpad = jnp.zeros((1, out_pad[li]), jnp.float32)
        bpad = bpad.at[0, :out_dims[li]].set(jnp.asarray(biases[li], jnp.float32))
        b_p.append(bpad)

    OUT_PAD = out_pad[-1]
    kernel = _make_actor_kernel(num_layers, action_dim, log_std_min, log_std_max)

    grid = (B_pad // bt,)
    in_specs = [pl.BlockSpec((bt, in_pad[0]), lambda i: (i, 0))]  # batch-tiled obs
    # Weights/biases: full-extent blocks, constant index -> VMEM-resident, DMA'd once.
    for li in range(num_layers):
        in_specs.append(pl.BlockSpec((in_pad[li], out_pad[li]), lambda i: (0, 0)))
    for li in range(num_layers):
        in_specs.append(pl.BlockSpec((1, out_pad[li]), lambda i: (0, 0)))

    out = pl.pallas_call(
        kernel,
        out_shape=jax.ShapeDtypeStruct((B_pad, OUT_PAD), jnp.float32),
        grid=grid,
        in_specs=in_specs,
        out_specs=pl.BlockSpec((bt, OUT_PAD), lambda i: (i, 0)),
        compiler_params=pltpu.CompilerParams(
            dimension_semantics=("parallel",),        # v7x: shard batch over 2 TCs
            vmem_limit_bytes=VMEM_BUDGET_BYTES + (8 << 20)),
    )(obs_p, *w_p, *b_p)

    mu = out[:B, :action_dim]
    std = out[:B, action_dim:2 * action_dim]
    # TODO(synk): utils.SquashedNormal is a torch.distributions object; the kernel
    # returns its (mu, std) parameters only.
    return mu, std


def _reference(obs, weights, biases, action_dim, log_std_bounds):
    """Pure-JAX f32 reference of the same forward pass."""
    h = obs
    n = len(weights)
    for i, (w, b) in enumerate(zip(weights, biases)):
        h = h @ w.T + b
        if i < n - 1:
            h = jnp.maximum(h, 0.0)
    mu, log_std = h[:, :action_dim], h[:, action_dim:]
    log_std = jnp.tanh(log_std)
    lo, hi = log_std_bounds
    log_std = lo + 0.5 * (hi - lo) * (log_std + 1.0)
    return mu, jnp.exp(log_std)


if __name__ == "__main__":
    # Small deterministic example: B=16, obs_dim=32, hidden=64, hidden_layers=2, A=4.
    key = jax.random.PRNGKey(0)
    B, D, H, A = 16, 32, 64, 4
    log_std_bounds = (-10.0, 2.0)
    ks = jax.random.split(key, 7)
    obs = jax.random.normal(ks[0], (B, D), jnp.float32)
    # PyTorch-layout weights: (out_features, in_features)
    w1 = jax.random.normal(ks[1], (H, D), jnp.float32) * 0.1
    b1 = jax.random.normal(ks[2], (H,), jnp.float32) * 0.1
    w2 = jax.random.normal(ks[3], (H, H), jnp.float32) * 0.1
    b2 = jax.random.normal(ks[4], (H,), jnp.float32) * 0.1
    w3 = jax.random.normal(ks[5], (2 * A, H), jnp.float32) * 0.1
    b3 = jax.random.normal(ks[6], (2 * A,), jnp.float32) * 0.1

    mu, std = drq_actor_forward(
        obs, (w1, w2, w3), (b1, b2, b3),
        action_dim=A, log_std_bounds=log_std_bounds)
    (mu, std) = jax.block_until_ready((mu, std))

    mu_ref, std_ref = _reference(obs, (w1, w2, w3), (b1, b2, b3), A, log_std_bounds)
    np.testing.assert_allclose(np.asarray(mu), np.asarray(mu_ref), rtol=0.25, atol=0.05)
    np.testing.assert_allclose(np.asarray(std), np.asarray(std_ref), rtol=0.25, atol=0.05)

    print("KERNEL_OK")
</pallas_src>

<mosaic_0001>
module attributes {stable_mosaic.version = 11 : i64} {
  func.func @kernel(%arg0: i32, %arg1: memref<16x128xbf16, #tpu.memory_space<vmem>>, %arg2: memref<128x128xbf16, #tpu.memory_space<vmem>>, %arg3: memref<128x128xbf16, #tpu.memory_space<vmem>>, %arg4: memref<128x128xbf16, #tpu.memory_space<vmem>>, %arg5: memref<1x128xf32, #tpu.memory_space<vmem>>, %arg6: memref<1x128xf32, #tpu.memory_space<vmem>>, %arg7: memref<1x128xf32, #tpu.memory_space<vmem>>, %arg8: memref<16x128xf32, #tpu.memory_space<vmem>>) attributes {dimension_semantics = [#tpu.dimension_semantics<parallel>], iteration_bounds = array<i64: 1>, scalar_prefetch = 0 : i64, scratch_operands = 0 : i64, tpu.core_type = #tpu.core_type<tc>, window_params = [{transform_indices = @transform_0, window_bounds = array<i64: 16, 128>}, {pipeline_mode = #tpu.pipeline_mode<synchronous>, transform_indices = @transform_1, window_bounds = array<i64: 128, 128>}, {pipeline_mode = #tpu.pipeline_mode<synchronous>, transform_indices = @transform_2, window_bounds = array<i64: 128, 128>}, {pipeline_mode = #tpu.pipeline_mode<synchronous>, transform_indices = @transform_3, window_bounds = array<i64: 128, 128>}, {pipeline_mode = #tpu.pipeline_mode<synchronous>, transform_indices = @transform_4, window_bounds = array<i64: 1, 128>}, {pipeline_mode = #tpu.pipeline_mode<synchronous>, transform_indices = @transform_5, window_bounds = array<i64: 1, 128>}, {pipeline_mode = #tpu.pipeline_mode<synchronous>, transform_indices = @transform_6, window_bounds = array<i64: 1, 128>}, {transform_indices = @transform_7, window_bounds = array<i64: 16, 128>}]} {
    %c0 = arith.constant 0 : index
    %c0_0 = arith.constant 0 : index
    %0 = vector.load %arg1[%c0, %c0_0] : memref<16x128xbf16, #tpu.memory_space<vmem>>, vector<16x128xbf16>
    %c0_1 = arith.constant 0 : index
    %c0_2 = arith.constant 0 : index
    %1 = vector.load %arg2[%c0_1, %c0_2] : memref<128x128xbf16, #tpu.memory_space<vmem>>, vector<128x128xbf16>
    %cst = arith.constant dense<0.000000e+00> : vector<16x128xf32>
    %2 = tpu.matmul %0, %1, %cst {dimension_numbers = #tpu.dot_dimension_numbers<[1], [0], [0], [1], [0, 0, 1, 1], [], []>} : vector<16x128xbf16>, vector<128x128xbf16>, vector<16x128xf32> -> vector<16x128xf32>
    %c0_3 = arith.constant 0 : index
    %c0_4 = arith.constant 0 : index
    %3 = vector.load %arg5[%c0_3, %c0_4] : memref<1x128xf32, #tpu.memory_space<vmem>>, vector<1x128xf32>
    %4 = vector.broadcast %3 : vector<1x128xf32> to vector<16x128xf32>
    %5 = arith.addf %2, %4 : vector<16x128xf32>
    %cst_5 = arith.constant 0.000000e+00 : f32
    %6 = vector.broadcast %cst_5 : f32 to vector<16x128xf32>
    %7 = arith.maximumf %5, %6 : vector<16x128xf32>
    %8 = arith.truncf %7 : vector<16x128xf32> to vector<16x128xbf16>
    %c0_6 = arith.constant 0 : index
    %c0_7 = arith.constant 0 : index
    %9 = vector.load %arg3[%c0_6, %c0_7] : memref<128x128xbf16, #tpu.memory_space<vmem>>, vector<128x128xbf16>
    %cst_8 = arith.constant dense<0.000000e+00> : vector<16x128xf32>
    %10 = tpu.matmul %8, %9, %cst_8 {dimension_numbers = #tpu.dot_dimension_numbers<[1], [0], [0], [1], [0, 0, 1, 1], [], []>} : vector<16x128xbf16>, vector<128x128xbf16>, vector<16x128xf32> -> vector<16x128xf32>
    %c0_9 = arith.constant 0 : index
    %c0_10 = arith.constant 0 : index
    %11 = vector.load %arg6[%c0_9, %c0_10] : memref<1x128xf32, #tpu.memory_space<vmem>>, vector<1x128xf32>
    %12 = vector.broadcast %11 : vector<1x128xf32> to vector<16x128xf32>
    %13 = arith.addf %10, %12 : vector<16x128xf32>
    %cst_11 = arith.constant 0.000000e+00 : f32
    %14 = vector.broadcast %cst_11 : f32 to vector<16x128xf32>
    %15 = arith.maximumf %13, %14 : vector<16x128xf32>
    %16 = arith.truncf %15 : vector<16x128xf32> to vector<16x128xbf16>
    %c0_12 = arith.constant 0 : index
    %c0_13 = arith.constant 0 : index
    %17 = vector.load %arg4[%c0_12, %c0_13] : memref<128x128xbf16, #tpu.memory_space<vmem>>, vector<128x128xbf16>
    %cst_14 = arith.constant dense<0.000000e+00> : vector<16x128xf32>
    %18 = tpu.matmul %16, %17, %cst_14 {dimension_numbers = #tpu.dot_dimension_numbers<[1], [0], [0], [1], [0, 0, 1, 1], [], []>} : vector<16x128xbf16>, vector<128x128xbf16>, vector<16x128xf32> -> vector<16x128xf32>
    %c0_15 = arith.constant 0 : index
    %c0_16 = arith.constant 0 : index
    %19 = vector.load %arg7[%c0_15, %c0_16] : memref<1x128xf32, #tpu.memory_space<vmem>>, vector<1x128xf32>
    %20 = vector.broadcast %19 : vector<1x128xf32> to vector<16x128xf32>
    %21 = arith.addf %18, %20 : vector<16x128xf32>
    %22 = tpu.iota {dimensions = array<i32: 1>} : vector<16x128xi32>
    %23 = math.tanh %21 : vector<16x128xf32>
    %cst_17 = arith.constant 1.000000e+00 : f32
    %24 = vector.broadcast %cst_17 : f32 to vector<16x128xf32>
    %25 = arith.addf %23, %24 : vector<16x128xf32>
    %cst_18 = arith.constant 6.000000e+00 : f32
    %26 = vector.broadcast %cst_18 : f32 to vector<16x128xf32>
    %27 = arith.mulf %26, %25 : vector<16x128xf32>
    %cst_19 = arith.constant -1.000000e+01 : f32
    %28 = vector.broadcast %cst_19 : f32 to vector<16x128xf32>
    %29 = arith.addf %28, %27 : vector<16x128xf32>
    %30 = math.exp %29 : vector<16x128xf32>
    %c4_i32 = arith.constant 4 : i32
    %31 = vector.broadcast %c4_i32 : i32 to vector<16x128xi32>
    %32 = arith.cmpi sge, %22, %31 : vector<16x128xi32>
    %33 = arith.select %32, %30, %21 : vector<16x128xi1>, vector<16x128xf32>
    %c0_20 = arith.constant 0 : index
    %c0_21 = arith.constant 0 : index
    %34 = vector.load %arg8[%c0_20, %c0_21] : memref<16x128xf32, #tpu.memory_space<vmem>>, vector<16x128xf32>
    tpu.vector_store %arg8[%c0_20, %c0_21], %33 {strides = array<i32>} : memref<16x128xf32, #tpu.memory_space<vmem>>, vector<16x128xf32>,
    return
  }
  func.func @transform_0(%arg0: i32) -> (i32, i32) {
    %c0_i32 = arith.constant 0 : i32
    %c0_i32_0 = arith.constant 0 : i32
    return %arg0, %c0_i32 : i32, i32
  }
  func.func @transform_1(%arg0: i32) -> (i32, i32) {
    %c0_i32 = arith.constant 0 : i32
    %c0_i32_0 = arith.constant 0 : i32
    %c0_i32_1 = arith.constant 0 : i32
    return %c0_i32, %c0_i32_0 : i32, i32
  }
  func.func @transform_2(%arg0: i32) -> (i32, i32) {
    %c0_i32 = arith.constant 0 : i32
    %c0_i32_0 = arith.constant 0 : i32
    %c0_i32_1 = arith.constant 0 : i32
    return %c0_i32, %c0_i32_0 : i32, i32
  }
  func.func @transform_3(%arg0: i32) -> (i32, i32) {
    %c0_i32 = arith.constant 0 : i32
    %c0_i32_0 = arith.constant 0 : i32
    %c0_i32_1 = arith.constant 0 : i32
    return %c0_i32, %c0_i32_0 : i32, i32
  }
  func.func @transform_4(%arg0: i32) -> (i32, i32) {
    %c0_i32 = arith.constant 0 : i32
    %c0_i32_0 = arith.constant 0 : i32
    %c0_i32_1 = arith.constant 0 : i32
    return %c0_i32, %c0_i32_0 : i32, i32
  }
  func.func @transform_5(%arg0: i32) -> (i32, i32) {
    %c0_i32 = arith.constant 0 : i32
    %c0_i32_0 = arith.constant 0 : i32
    %c0_i32_1 = arith.constant 0 : i32
    return %c0_i32, %c0_i32_0 : i32, i32
  }
  func.func @transform_6(%arg0: i32) -> (i32, i32) {
    %c0_i32 = arith.constant 0 : i32
    %c0_i32_0 = arith.constant 0 : i32
    %c0_i32_1 = arith.constant 0 : i32
    return %c0_i32, %c0_i32_0 : i32, i32
  }
  func.func @transform_7(%arg0: i32) -> (i32, i32) {
    %c0_i32 = arith.constant 0 : i32
    %c0_i32_0 = arith.constant 0 : i32
    return %arg0, %c0_i32 : i32, i32
  }
}

</mosaic_0001>

<llo_original>
// kernel: drq_actor_forward.1
$region0: #{drq_actor_forward.1}
  #allocation0 [shape = 'u32[]', space=smem, size = 0x4, offset = 0x4, fixed_abs, tag = 'smem constant byte address 0x4 - core index']
  #allocation1 [shape = 'u32[144,128]{1,0:T(1,128)}', space=vmem, size = 0x12000, scoped, tag = 'internal scratch']
  %s0 = inlined_call_operand.vmem [shape: bf16[16,128], index: 0, kind: input, shape index: {}]
  %s1 = inlined_call_operand.vmem [shape: bf16[128,128], index: 1, kind: input, shape index: {}]
  %s2 = inlined_call_operand.vmem [shape: bf16[128,128], index: 2, kind: input, shape index: {}]
  %s3 = inlined_call_operand.vmem [shape: bf16[128,128], index: 3, kind: input, shape index: {}]
  %s4 = inlined_call_operand.vmem [shape: f32[1,128], index: 4, kind: input, shape index: {}]
  %s5 = inlined_call_operand.vmem [shape: f32[1,128], index: 5, kind: input, shape index: {}]
  %s6 = inlined_call_operand.vmem [shape: f32[1,128], index: 6, kind: input, shape index: {}]
  %s7 = inlined_call_operand.vmem [shape: f32[16,128], index: 7, kind: output, shape index: {}]
  %s8 = sld [smem:[#allocation0]]
  $region38: #{drq_actor_forward.1} parent=0
    _
  %s10 = ssub.s32 1, %s8
  %s11 = scalar_select 0, %s10, %s8
  // Predicated region
  $region2: #{drq_actor_forward.1} parent=0 // pred_check
    _
  $region3: #{drq_actor_forward.1} parent=0 // pred_check_branch
    %13 = sbr.rel (0) target = $region5
  $region4: #{drq_actor_forward.1} parent=0 // pred_region
    _
  $region5: #{drq_actor_forward.1} parent=0 // pred_fallthru
    _
  // Predicated region
  $region6: #{drq_actor_forward.1} parent=0 // pred_check
    _
  $region7: #{drq_actor_forward.1} parent=0 // pred_check_branch
    %15 = sbr.rel (0) target = $region9
  $region8: #{drq_actor_forward.1} parent=0 // pred_region
    _
  $region9: #{drq_actor_forward.1} parent=0 // pred_fallthru
    _
  // Predicated region
  $region10: #{drq_actor_forward.1} parent=0 // pred_check
    _
  $region11: #{drq_actor_forward.1} parent=0 // pred_check_branch
    %17 = sbr.rel (0) target = $region13
  $region12: #{drq_actor_forward.1} parent=0 // pred_region
    _
  $region13: #{drq_actor_forward.1} parent=0 // pred_fallthru
    _
  // Predicated region
  $region14: #{drq_actor_forward.1} parent=0 // pred_check
    _
  $region15: #{drq_actor_forward.1} parent=0 // pred_check_branch
    %19 = sbr.rel (0) target = $region17
  $region16: #{drq_actor_forward.1} parent=0 // pred_region
    _
  $region17: #{drq_actor_forward.1} parent=0 // pred_fallthru
    _
  // Predicated region
  $region18: #{drq_actor_forward.1} parent=0 // pred_check
    _
  $region19: #{drq_actor_forward.1} parent=0 // pred_check_branch
    %21 = sbr.rel (0) target = $region21
  $region20: #{drq_actor_forward.1} parent=0 // pred_region
    _
  $region21: #{drq_actor_forward.1} parent=0 // pred_fallthru
    _
  // Predicated region
  $region22: #{drq_actor_forward.1} parent=0 // pred_check
    _
  $region23: #{drq_actor_forward.1} parent=0 // pred_check_branch
    %23 = sbr.rel (0) target = $region25
  $region24: #{drq_actor_forward.1} parent=0 // pred_region
    _
  $region25: #{drq_actor_forward.1} parent=0 // pred_fallthru
    _
  // Predicated region
  $region26: #{drq_actor_forward.1} parent=0 // pred_check
    _
  $region27: #{drq_actor_forward.1} parent=0 // pred_check_branch
    %25 = sbr.rel (0) target = $region29
  $region28: #{drq_actor_forward.1} parent=0 // pred_region
    _
  $region29: #{drq_actor_forward.1} parent=0 // pred_fallthru
    _
  %v27 = vld [vmem:[%s0] sm:$0xf]
  %v28 = vld [vmem:[%s0 + $0x4] sm:$0xf]
  %v29 = vld [vmem:[%s1] sm:$0xf]
  %v30 = vld [vmem:[%s1 + $0x4] sm:$0xf]
  %v31 = vld [vmem:[%s1 + $0x8] sm:$0xf]
  %v32 = vld [vmem:[%s1 + $0xc] sm:$0xf]
  %v33 = vld [vmem:[%s1 + $0x10] sm:$0xf]
  %v34 = vld [vmem:[%s1 + $0x14] sm:$0xf]
  %v35 = vld [vmem:[%s1 + $0x18] sm:$0xf]
  %v36 = vld [vmem:[%s1 + $0x1c] sm:$0xf]
  %v37 = vld [vmem:[%s1 + $0x20] sm:$0xf]
  %v38 = vld [vmem:[%s1 + $0x24] sm:$0xf]
  %v39 = vld [vmem:[%s1 + $0x28] sm:$0xf]
  %v40 = vld [vmem:[%s1 + $0x2c] sm:$0xf]
  %v41 = vld [vmem:[%s1 + $0x30] sm:$0xf]
  %v42 = vld [vmem:[%s1 + $0x34] sm:$0xf]
  %v43 = vld [vmem:[%s1 + $0x38] sm:$0xf]
  %v44 = vld [vmem:[%s1 + $0x3c] sm:$0xf]
  %v45 = vld [vmem:[%s4] sm:$0x1]
  %v47 = vlaneseq
  %v48 = vshrl.u32 %v47, 7
  %v49 = vsub.s32 0, %v48
  %v50 = vrot.slane %v45, %v49
  %v54 = vunpack.c.l.b16 %v27
  %v55 = vunpack.c.l.b16 %v28
  %v56 = vpack.c.b16 %v55, %v54
  %v74 = vunpack.c.l.b16 %v29
  %v75 = vunpack.c.l.b16 %v30
  %v76 = vunpack.c.l.b16 %v31
  %v77 = vunpack.c.l.b16 %v32
  %v78 = vunpack.c.l.b16 %v33
  %v79 = vunpack.c.l.b16 %v34
  %v80 = vunpack.c.l.b16 %v35
  %v81 = vunpack.c.l.b16 %v36
  %v82 = vunpack.c.l.b16 %v37
  %v83 = vunpack.c.l.b16 %v38
  %v84 = vunpack.c.l.b16 %v39
  %v85 = vunpack.c.l.b16 %v40
  %v86 = vunpack.c.l.b16 %v41
  %v87 = vunpack.c.l.b16 %v42
  %v88 = vunpack.c.l.b16 %v43
  %v89 = vunpack.c.l.b16 %v44
  %v90 = vpack.c.b16 %v75, %v74
  %v91 = vpack.c.b16 %v77, %v76
  %v92 = vpack.c.b16 %v79, %v78
  %v93 = vpack.c.b16 %v81, %v80
  %v94 = vpack.c.b16 %v83, %v82
  %v95 = vpack.c.b16 %v85, %v84
  %v96 = vpack.c.b16 %v87, %v86
  %v97 = vpack.c.b16 %v89, %v88
  %106 = vmatprep.subr.bf16.mxu0 0
  %107 = vmatpush1.bf16.msra.mxu0 %v90
  %108 = vmatprep.subr.bf16.mxu0 0
  %109 = vmatpush1.bf16.msra.mxu0 %v91
  %110 = vmatprep.subr.bf16.mxu0 0
  %111 = vmatpush1.bf16.msra.mxu0 %v92
  %112 = vmatprep.subr.bf16.mxu0 0
  %113 = vmatpush1.bf16.msra.mxu0 %v93
  %114 = vmatprep.subr.bf16.mxu0 0
  %115 = vmatpush1.bf16.msra.mxu0 %v94
  %116 = vmatprep.subr.bf16.mxu0 0
  %117 = vmatpush1.bf16.msra.mxu0 %v95
  %118 = vmatprep.subr.bf16.mxu0 0
  %119 = vmatpush1.bf16.msra.mxu0 %v96
  %120 = vmatprep.subr.bf16.mxu0 0
  %121 = vmatpush1.bf16.msra.mxu0 %v97
  %122 = vmatprep.subr.bf16.mxu0 0
  %123 = vmatpush1.bf16.msra.mxu0 0
  %124 = vmatprep.subr.bf16.mxu0 0
  %125 = vmatpush1.bf16.msra.mxu0 0
  %126 = vmatprep.subr.bf16.mxu0 0
  %127 = vmatpush1.bf16.msra.mxu0 0
  %128 = vmatprep.subr.bf16.mxu0 0
  %129 = vmatpush1.bf16.msra.mxu0 0
  %130 = vmatprep.subr.bf16.mxu0 0
  %131 = vmatpush1.bf16.msra.mxu0 0
  %132 = vmatprep.subr.bf16.mxu0 0
  %133 = vmatpush1.bf16.msra.mxu0 0
  %134 = vmatprep.subr.bf16.mxu0 0
  %135 = vmatpush1.bf16.msra.mxu0 0
  %136 = vmatprep.subr.bf16.mxu0 0
  %137 = vmatpush1.bf16.msra.mxu0 0
  %138 = vmatprep.mubr.bf16.mxu0 0
  %139 = vmatmul.mubr.bf16.gmra.mrb[0].mxu0 %v56
  %v140 = vpop.f32.mrb[0].mxu0
  %v141 = vadd.f32 %v50, %v140
  %v142 = vpop.f32.mrb[0].mxu0
  %v143 = vpop.f32.mrb[0].mxu0
  %v144 = vadd.f32 %v50, %v143
  %v145 = vpop.f32.mrb[0].mxu0
  %146 = vdwg.mxu0
  %v147 = vmax.f32 %v141, 0.0
  %v148 = vmax.f32 %v144, 0.0
  %v149 = vpack.c.bf16 %v148, %v147
  %v150 = vld [vmem:[%s2] sm:$0xf]
  %v151 = vld [vmem:[%s2 + $0x4] sm:$0xf]
  %v152 = vld [vmem:[%s2 + $0x8] sm:$0xf]
  %v153 = vld [vmem:[%s2 + $0xc] sm:$0xf]
  %v154 = vld [vmem:[%s2 + $0x10] sm:$0xf]
  %v155 = vld [vmem:[%s2 + $0x14] sm:$0xf]
  %v156 = vld [vmem:[%s2 + $0x18] sm:$0xf]
  %v157 = vld [vmem:[%s2 + $0x1c] sm:$0xf]
  %v158 = vld [vmem:[%s2 + $0x20] sm:$0xf]
  %v159 = vld [vmem:[%s2 + $0x24] sm:$0xf]
  %v160 = vld [vmem:[%s2 + $0x28] sm:$0xf]
  %v161 = vld [vmem:[%s2 + $0x2c] sm:$0xf]
  %v162 = vld [vmem:[%s2 + $0x30] sm:$0xf]
  %v163 = vld [vmem:[%s2 + $0x34] sm:$0xf]
  %v164 = vld [vmem:[%s2 + $0x38] sm:$0xf]
  %v165 = vld [vmem:[%s2 + $0x3c] sm:$0xf]
  %v166 = vld [vmem:[%s5] sm:$0x1]
  %v168 = vlaneseq
  %v169 = vshrl.u32 %v168, 7
  %v170 = vsub.s32 0, %v169
  %v171 = vrot.slane %v166, %v170
  %v189 = vunpack.c.l.b16 %v150
  %v190 = vunpack.c.l.b16 %v151
  %v191 = vunpack.c.l.b16 %v152
  %v192 = vunpack.c.l.b16 %v153
  %v193 = vunpack.c.l.b16 %v154
  %v194 = vunpack.c.l.b16 %v155
  %v195 = vunpack.c.l.b16 %v156
  %v196 = vunpack.c.l.b16 %v157
  %v197 = vunpack.c.l.b16 %v158
  %v198 = vunpack.c.l.b16 %v159
  %v199 = vunpack.c.l.b16 %v160
  %v200 = vunpack.c.l.b16 %v161
  %v201 = vunpack.c.l.b16 %v162
  %v202 = vunpack.c.l.b16 %v163
  %v203 = vunpack.c.l.b16 %v164
  %v204 = vunpack.c.l.b16 %v165
  %v205 = vpack.c.b16 %v190, %v189
  %v206 = vpack.c.b16 %v192, %v191
  %v207 = vpack.c.b16 %v194, %v193
  %v208 = vpack.c.b16 %v196, %v195
  %v209 = vpack.c.b16 %v198, %v197
  %v210 = vpack.c.b16 %v200, %v199
  %v211 = vpack.c.b16 %v202, %v201
  %v212 = vpack.c.b16 %v204, %v203
  %221 = vmatprep.subr.bf16.mxu0 0
  %222 = vmatpush1.bf16.msra.mxu0 %v205
  %223 = vmatprep.subr.bf16.mxu0 0
  %224 = vmatpush1.bf16.msra.mxu0 %v206
  %225 = vmatprep.subr.bf16.mxu0 0
  %226 = vmatpush1.bf16.msra.mxu0 %v207
  %227 = vmatprep.subr.bf16.mxu0 0
  %228 = vmatpush1.bf16.msra.mxu0 %v208
  %229 = vmatprep.subr.bf16.mxu0 0
  %230 = vmatpush1.bf16.msra.mxu0 %v209
  %231 = vmatprep.subr.bf16.mxu0 0
  %232 = vmatpush1.bf16.msra.mxu0 %v210
  %233 = vmatprep.subr.bf16.mxu0 0
  %234 = vmatpush1.bf16.msra.mxu0 %v211
  %235 = vmatprep.subr.bf16.mxu0 0
  %236 = vmatpush1.bf16.msra.mxu0 %v212
  %237 = vmatprep.subr.bf16.mxu0 0
  %238 = vmatpush1.bf16.msra.mxu0 0
  %239 = vmatprep.subr.bf16.mxu0 0
  %240 = vmatpush1.bf16.msra.mxu0 0
  %241 = vmatprep.subr.bf16.mxu0 0
  %242 = vmatpush1.bf16.msra.mxu0 0
  %243 = vmatprep.subr.bf16.mxu0 0
  %244 = vmatpush1.bf16.msra.mxu0 0
  %245 = vmatprep.subr.bf16.mxu0 0
  %246 = vmatpush1.bf16.msra.mxu0 0
  %247 = vmatprep.subr.bf16.mxu0 0
  %248 = vmatpush1.bf16.msra.mxu0 0
  %249 = vmatprep.subr.bf16.mxu0 0
  %250 = vmatpush1.bf16.msra.mxu0 0
  %251 = vmatprep.subr.bf16.mxu0 0
  %252 = vmatpush1.bf16.msra.mxu0 0
  %253 = vmatprep.mubr.bf16.mxu0 0
  %254 = vmatmul.mubr.bf16.gmra.mrb[0].mxu0 %v149
  %v255 = vpop.f32.mrb[0].mxu0
  %v256 = vadd.f32 %v171, %v255
  %v257 = vpop.f32.mrb[0].mxu0
  %v258 = vpop.f32.mrb[0].mxu0
  %v259 = vadd.f32 %v171, %v258
  %v260 = vpop.f32.mrb[0].mxu0
  %261 = vdwg.mxu0
  %v262 = vmax.f32 %v256, 0.0
  %v263 = vmax.f32 %v259, 0.0
  %v264 = vpack.c.bf16 %v263, %v262
  %v265 = vld [vmem:[%s3] sm:$0xf]
  %v266 = vld [vmem:[%s3 + $0x4] sm:$0xf]
  %v267 = vld [vmem:[%s3 + $0x8] sm:$0xf]
  %v268 = vld [vmem:[%s3 + $0xc] sm:$0xf]
  %v269 = vld [vmem:[%s3 + $0x10] sm:$0xf]
  %v270 = vld [vmem:[%s3 + $0x14] sm:$0xf]
  %v271 = vld [vmem:[%s3 + $0x18] sm:$0xf]
  %v272 = vld [vmem:[%s3 + $0x1c] sm:$0xf]
  %v273 = vld [vmem:[%s3 + $0x20] sm:$0xf]
  %v274 = vld [vmem:[%s3 + $0x24] sm:$0xf]
  %v275 = vld [vmem:[%s3 + $0x28] sm:$0xf]
  %v276 = vld [vmem:[%s3 + $0x2c] sm:$0xf]
  %v277 = vld [vmem:[%s3 + $0x30] sm:$0xf]
  %v278 = vld [vmem:[%s3 + $0x34] sm:$0xf]
  %v279 = vld [vmem:[%s3 + $0x38] sm:$0xf]
  %v280 = vld [vmem:[%s3 + $0x3c] sm:$0xf]
  %v281 = vld [vmem:[%s6] sm:$0x1]
  %v283 = vlaneseq
  %v284 = vshrl.u32 %v283, 7
  %v285 = vsub.s32 0, %v284
  %v286 = vrot.slane %v281, %v285
  %v304 = vunpack.c.l.b16 %v265
  %v305 = vunpack.c.l.b16 %v266
  %v306 = vunpack.c.l.b16 %v267
  %v307 = vunpack.c.l.b16 %v268
  %v308 = vunpack.c.l.b16 %v269
  %v309 = vunpack.c.l.b16 %v270
  %v310 = vunpack.c.l.b16 %v271
  %v311 = vunpack.c.l.b16 %v272
  %v312 = vunpack.c.l.b16 %v273
  %v313 = vunpack.c.l.b16 %v274
  %v314 = vunpack.c.l.b16 %v275
  %v315 = vunpack.c.l.b16 %v276
  %v316 = vunpack.c.l.b16 %v277
  %v317 = vunpack.c.l.b16 %v278
  %v318 = vunpack.c.l.b16 %v279
  %v319 = vunpack.c.l.b16 %v280
  %v320 = vpack.c.b16 %v305, %v304
  %v321 = vpack.c.b16 %v307, %v306
  %v322 = vpack.c.b16 %v309, %v308
  %v323 = vpack.c.b16 %v311, %v310
  %v324 = vpack.c.b16 %v313, %v312
  %v325 = vpack.c.b16 %v315, %v314
  %v326 = vpack.c.b16 %v317, %v316
  %v327 = vpack.c.b16 %v319, %v318
  %336 = vmatprep.subr.bf16.mxu0 0
  %337 = vmatpush1.bf16.msra.mxu0 %v320
  %338 = vmatprep.subr.bf16.mxu0 0
  %339 = vmatpush1.bf16.msra.mxu0 %v321
  %340 = vmatprep.subr.bf16.mxu0 0
  %341 = vmatpush1.bf16.msra.mxu0 %v322
  %342 = vmatprep.subr.bf16.mxu0 0
  %343 = vmatpush1.bf16.msra.mxu0 %v323
  %344 = vmatprep.subr.bf16.mxu0 0
  %345 = vmatpush1.bf16.msra.mxu0 %v324
  %346 = vmatprep.subr.bf16.mxu0 0
  %347 = vmatpush1.bf16.msra.mxu0 %v325
  %348 = vmatprep.subr.bf16.mxu0 0
  %349 = vmatpush1.bf16.msra.mxu0 %v326
  %350 = vmatprep.subr.bf16.mxu0 0
  %351 = vmatpush1.bf16.msra.mxu0 %v327
  %352 = vmatprep.subr.bf16.mxu0 0
  %353 = vmatpush1.bf16.msra.mxu0 0
  %354 = vmatprep.subr.bf16.mxu0 0
  %355 = vmatpush1.bf16.msra.mxu0 0
  %356 = vmatprep.subr.bf16.mxu0 0
  %357 = vmatpush1.bf16.msra.mxu0 0
  %358 = vmatprep.subr.bf16.mxu0 0
  %359 = vmatpush1.bf16.msra.mxu0 0
  %360 = vmatprep.subr.bf16.mxu0 0
  %361 = vmatpush1.bf16.msra.mxu0 0
  %362 = vmatprep.subr.bf16.mxu0 0
  %363 = vmatpush1.bf16.msra.mxu0 0
  %364 = vmatprep.subr.bf16.mxu0 0
  %365 = vmatpush1.bf16.msra.mxu0 0
  %366 = vmatprep.subr.bf16.mxu0 0
  %367 = vmatpush1.bf16.msra.mxu0 0
  %368 = vmatprep.mubr.bf16.mxu0 0
  %369 = vmatmul.mubr.bf16.gmra.mrb[0].mxu0 %v264
  %v370 = vpop.f32.mrb[0].mxu0
  %v371 = vadd.f32 %v286, %v370
  %v372 = vpop.f32.mrb[0].mxu0
  %v373 = vpop.f32.mrb[0].mxu0
  %v374 = vadd.f32 %v286, %v373
  %v375 = vpop.f32.mrb[0].mxu0
  %376 = vdwg.mxu0
  %v377 = vlaneseq
  %v378 = vand.u32 %v377, 127
  %v379 = vtanh.pop %v371
  %v380 = vtanh.pop %v374
  %v381 = vadd.f32 %v379, 1.0
  %v382 = vadd.f32 %v380, 1.0
  %v383 = vmul.f32 %v381, 6.0
  %v384 = vmul.f32 %v382, 6.0
  %v385 = vadd.f32 %v383, -10.0
  %v386 = vadd.f32 %v384, -10.0
  %v387 = vmul.f32 %v385, 1.442695
  %v388 = vpow.pop %v387
  %v389 = vmul.f32 %v386, 1.442695
  %v390 = vpow.pop %v389
  %vm391 = vcmp.ge.s32.totalorder %v378, 4
  %v392 = vsel %vm391, %v388, %v371
  %v393 = vsel %vm391, %v390, %v374
  %394 = vst [vmem:[%s7] sm:$0xff] %v392
  %395 = vst [vmem:[%s7 + $0x8] sm:$0xff] %v393
  // Predicated region
  $region30: #{drq_actor_forward.1} parent=0 // pred_check
    _
  $region31: #{drq_actor_forward.1} parent=0 // pred_check_branch
    %397 = sbr.rel (0) target = $region33
  $region32: #{drq_actor_forward.1} parent=0 // pred_region
    _
  $region33: #{drq_actor_forward.1} parent=0 // pred_fallthru
    _
  // Predicated region
  $region34: #{drq_actor_forward.1} parent=0 // pred_check
    _
  $region35: #{drq_actor_forward.1} parent=0 // pred_check_branch
    %399 = sbr.rel (0) target = $region37
  $region36: #{drq_actor_forward.1} parent=0 // pred_region
    _
  $region37: #{drq_actor_forward.1} parent=0 // pred_fallthru
    _

</llo_original>
